<compile_context>
chip_gen: v7x
topology: tpu7x:2x2x1
jax: 0.10.0
libtpu: 0.0.40
codegen_flags: <defaults>
</compile_context>

<pallas_src>
import jax
import jax.numpy as jnp
from jax.experimental import pallas as pl
from jax.experimental.pallas import tpu as pltpu

_CHUNK = 128  # lane width of one in-kernel gather / matmul chunk (one vreg row)


def _round_up(x, m):
    return ((x + m - 1) // m) * m


def _edge_score_kernel(src_ref, dst_ref, tbl_ref, w_ref, b_ref, out_ref):
    # src_ref/dst_ref : [1, 1, tile_e] int32   edge endpoints for this tile
    # tbl_ref         : [n_seg, F, 128] f32    lane-major node features (VMEM resident)
    # w_ref           : [C, 2F]  bf16          original nn.Linear weight (halves padded)
    # b_ref           : [C, 1]   f32           bias as a column
    # out_ref         : [C, tile_e] f32        per-edge scores (transposed, lane-dense)
    n_seg, feat, _ = tbl_ref.shape
    _, tile_e = out_ref.shape
    n_chunks = tile_e // _CHUNK

    src_idx = src_ref[0]          # [1, tile_e] int32
    dst_idx = dst_ref[0]          # [1, tile_e] int32
    w = w_ref[...]                # [C, 2F] bf16 (resident)
    b = b_ref[...]                # [C, 1]  f32

    def gather_cols(node_ids):
        # node_ids: [1, _CHUNK] int32 -> gathered features [F, _CHUNK] f32.
        # node id -> (segment, lane-within-segment); gather stays in VMEM/vregs.
        lane = jnp.bitwise_and(node_ids, 127)        # id %  128
        lane_b = jnp.broadcast_to(lane, (feat, _CHUNK))
        acc = jnp.take_along_axis(tbl_ref[0], lane_b, axis=1,
                                  mode="promise_in_bounds")
        if n_seg > 1:
            seg = jnp.right_shift(node_ids, 7)       # id // 128
            seg_b = jnp.broadcast_to(seg, (feat, _CHUNK))
            for s in range(1, n_seg):                # n_seg is small & static
                g = jnp.take_along_axis(tbl_ref[s], lane_b, axis=1,
                                        mode="promise_in_bounds")
                acc = jnp.where(seg_b == s, g, acc)
        return acc

    for c in range(n_chunks):                        # static, small unrolled loop
        lo, hi = c * _CHUNK, (c + 1) * _CHUNK
        hu_t = gather_cols(src_idx[:, lo:hi])        # [F, 128] == h[src].T chunk
        hv_t = gather_cols(dst_idx[:, lo:hi])        # [F, 128] == h[dst].T chunk
        # cat([h_u, h_v], dim=1) becomes a sublane stack in this layout.
        x_t = jnp.concatenate([hu_t, hv_t], axis=0).astype(jnp.bfloat16)  # [2F, 128]
        # single fused K=2F bf16 MXU matmul, f32 accumulation + f32 bias,
        # stored directly in the lane-dense transposed layout (no XLU transpose).
        out_ref[:, lo:hi] = (jnp.dot(w, x_t, preferred_element_type=jnp.float32)
                             + b).astype(out_ref.dtype)                   # [C, 128]


def mlp_predictor_forward(src, dst, h, e, weight, bias, *, tile_e=512):
    """Pallas implementation of MLPPredictor.forward.

    src, dst : int  [E]      edge endpoints
    h        : f32  [N, F]   node features
    e        : f32  [E, Fe]  edge features (read by apply_edges but never used)
    weight   : f32  [C, 2F]  nn.Linear weight
    bias     : f32  [C]      nn.Linear bias
    returns  : f32  [E, C]   per-edge scores
    """
    del e  # edges.data['h'] never feeds the score
    E = src.shape[0]
    N, F = h.shape
    C = weight.shape[0]
    assert weight.shape == (C, 2 * F)

    # ---- static sizing ---------------------------------------------------
    tile_e = max(_CHUNK, _round_up(tile_e, _CHUNK))   # multiple of 128, sweepable
    tile_e = min(tile_e, _round_up(E, _CHUNK))        # don't over-tile tiny graphs
    grid_e = pl.cdiv(E, tile_e)
    e_pad = grid_e * tile_e
    f_pad = _round_up(F, 8)
    n_pad = _round_up(N, _CHUNK)
    n_seg = n_pad // _CHUNK
    # TODO(synk): for very large node tables (n_seg * f_pad * 512 B approaching
    # the VMEM budget, especially v7x's 64 MiB) switch to a DMA-paged gather of
    # node rows instead of the fully resident table.

    # ---- operand packing (plain-JAX glue, O(N)/O(E) index work only) ------
    # Lane-major node table: tbl[s, f, l] == h[s*128 + l, f]
    tbl = jnp.zeros((f_pad, n_pad), jnp.float32).at[:F, :N].set(
        h.T.astype(jnp.float32))
    tbl = tbl.reshape(f_pad, n_seg, _CHUNK).transpose(1, 0, 2)   # [n_seg, F, 128]

    # Weight kept in its original [C, 2F] layout (halves padded to f_pad), bf16.
    w_p = jnp.zeros((C, 2 * f_pad), jnp.float32)
    w_p = w_p.at[:, :F].set(weight[:, :F].astype(jnp.float32))
    w_p = w_p.at[:, f_pad:f_pad + F].set(weight[:, F:].astype(jnp.float32))
    w_bf16 = w_p.astype(jnp.bfloat16)
    b_col = bias.reshape(C, 1).astype(jnp.float32)

    # Edge endpoints, padded with a valid node index (0) and tiled for the grid.
    def pack_idx(idx):
        idx = jnp.zeros((e_pad,), jnp.int32).at[:E].set(idx.astype(jnp.int32))
        return idx.reshape(grid_e, 1, tile_e)

    src3 = pack_idx(src)
    dst3 = pack_idx(dst)

    out_t = pl.pallas_call(
        _edge_score_kernel,
        out_shape=jax.ShapeDtypeStruct((C, e_pad), jnp.float32),
        grid_spec=pltpu.PrefetchScalarGridSpec(
            num_scalar_prefetch=0,
            grid=(grid_e,),
            in_specs=[
                pl.BlockSpec((1, 1, tile_e), lambda i: (i, 0, 0)),          # src ids
                pl.BlockSpec((1, 1, tile_e), lambda i: (i, 0, 0)),          # dst ids
                pl.BlockSpec((n_seg, f_pad, _CHUNK), lambda i: (0, 0, 0)),  # node table (resident)
                pl.BlockSpec((C, 2 * f_pad), lambda i: (0, 0)),             # weight (resident)
                pl.BlockSpec((C, 1), lambda i: (0, 0)),                     # bias (resident)
            ],
            out_specs=pl.BlockSpec((C, tile_e), lambda i: (0, i)),          # lane-dense scores
        ),
        compiler_params=pltpu.CompilerParams(
            dimension_semantics=("parallel",),
            vmem_limit_bytes=48 * 1024 * 1024,
        ),
    )(src3, dst3, tbl, w_bf16, b_col)
    # Layout plumbing back to the PyTorch [E, C] convention.
    return out_t.T[:E]


def reference_forward(src, dst, h, weight, bias):
    h_u = jnp.take(h, src, axis=0)
    h_v = jnp.take(h, dst, axis=0)
    return jnp.concatenate([h_u, h_v], axis=1) @ weight.T + bias[None, :]


if __name__ == "__main__":
    key = jax.random.PRNGKey(0)
    k_h, k_e, k_w, k_b, k_src, k_dst = jax.random.split(key, 6)

    # Small synthetic graph.
    num_nodes = 6
    num_edges = 16
    in_features = 32
    out_classes = 8

    h = jax.random.normal(k_h, (num_nodes, in_features), dtype=jnp.float32)
    e = jax.random.normal(k_e, (num_edges, in_features), dtype=jnp.float32)
    src = jax.random.randint(k_src, (num_edges,), 0, num_nodes, dtype=jnp.int32)
    dst = jax.random.randint(k_dst, (num_edges,), 0, num_nodes, dtype=jnp.int32)

    # Deterministic parameter init (same shapes as nn.Linear(2F, C)).
    weight = (jax.random.normal(k_w, (out_classes, 2 * in_features),
                                dtype=jnp.float32)
              * (1.0 / jnp.sqrt(2.0 * in_features)))
    bias = jax.random.normal(k_b, (out_classes,), dtype=jnp.float32) * 0.01

    score = mlp_predictor_forward(src, dst, h, e, weight, bias)
    score = jax.block_until_ready(score)

    ref = reference_forward(src, dst, h, weight, bias)
    assert score.shape == (num_edges, out_classes)
    # bf16 MXU inputs with f32 accumulation -> compare at bf16-level tolerance.
    assert jnp.allclose(score, ref, atol=5e-2, rtol=5e-2), (
        float(jnp.max(jnp.abs(score - ref))))

    print("KERNEL_OK")
</pallas_src>

<mosaic_0001>
module attributes {stable_mosaic.version = 11 : i64} {
  func.func @_edge_score_kernel(%arg0: i32, %arg1: memref<1x1x128xi32, #tpu.memory_space<vmem>>, %arg2: memref<1x1x128xi32, #tpu.memory_space<vmem>>, %arg3: memref<1x32x128xf32, #tpu.memory_space<vmem>>, %arg4: memref<8x64xbf16, #tpu.memory_space<vmem>>, %arg5: memref<8x1xf32, #tpu.memory_space<vmem>>, %arg6: memref<8x128xf32, #tpu.memory_space<vmem>>) attributes {dimension_semantics = [#tpu.dimension_semantics<parallel>], iteration_bounds = array<i64: 1>, scalar_prefetch = 0 : i64, scratch_operands = 0 : i64, tpu.core_type = #tpu.core_type<tc>, window_params = [{transform_indices = @transform_0, window_bounds = array<i64: 1, 1, 128>}, {transform_indices = @transform_1, window_bounds = array<i64: 1, 1, 128>}, {pipeline_mode = #tpu.pipeline_mode<synchronous>, transform_indices = @transform_2, window_bounds = array<i64: 1, 32, 128>}, {pipeline_mode = #tpu.pipeline_mode<synchronous>, transform_indices = @transform_3, window_bounds = array<i64: 8, 64>}, {pipeline_mode = #tpu.pipeline_mode<synchronous>, transform_indices = @transform_4, window_bounds = array<i64: 8, 1>}, {transform_indices = @transform_5, window_bounds = array<i64: 8, 128>}]} {
    %c0 = arith.constant 0 : index
    %c0_0 = arith.constant 0 : index
    %c0_1 = arith.constant 0 : index
    %0 = vector.load %arg1[%c0, %c0_0, %c0_1] : memref<1x1x128xi32, #tpu.memory_space<vmem>>, vector<1x1x128xi32>
    %1 = vector.shape_cast %0 : vector<1x1x128xi32> to vector<1x128xi32>
    %c0_2 = arith.constant 0 : index
    %c0_3 = arith.constant 0 : index
    %c0_4 = arith.constant 0 : index
    %2 = vector.load %arg2[%c0_2, %c0_3, %c0_4] : memref<1x1x128xi32, #tpu.memory_space<vmem>>, vector<1x1x128xi32>
    %3 = vector.shape_cast %2 : vector<1x1x128xi32> to vector<1x128xi32>
    %c0_5 = arith.constant 0 : index
    %c0_6 = arith.constant 0 : index
    %4 = vector.load %arg4[%c0_5, %c0_6] : memref<8x64xbf16, #tpu.memory_space<vmem>>, vector<8x64xbf16>
    %c0_7 = arith.constant 0 : index
    %c0_8 = arith.constant 0 : index
    %5 = vector.load %arg5[%c0_7, %c0_8] : memref<8x1xf32, #tpu.memory_space<vmem>>, vector<8x1xf32>
    %c127_i32 = arith.constant 127 : i32
    %6 = vector.broadcast %c127_i32 : i32 to vector<1x128xi32>
    %7 = arith.andi %1, %6 : vector<1x128xi32>
    %8 = vector.shape_cast %7 : vector<1x128xi32> to vector<1x128xi32>
    %9 = vector.broadcast %8 : vector<1x128xi32> to vector<32x128xi32>
    %c0_9 = arith.constant 0 : index
    %c0_10 = arith.constant 0 : index
    %c0_11 = arith.constant 0 : index
    %10 = vector.load %arg3[%c0_9, %c0_10, %c0_11] : memref<1x32x128xf32, #tpu.memory_space<vmem>>, vector<1x32x128xf32>
    %11 = vector.shape_cast %10 : vector<1x32x128xf32> to vector<32x128xf32>
    %12 = vector.shape_cast %9 : vector<32x128xi32> to vector<32x128x1xi32>
    %13 = vector.shape_cast %12 : vector<32x128x1xi32> to vector<32x128xi32>
    %14 = tpu.dynamic_gather %11[%13] in [1] : vector<32x128xf32>, vector<32x128xi32> -> vector<32x128xf32>
    %c127_i32_12 = arith.constant 127 : i32
    %15 = vector.broadcast %c127_i32_12 : i32 to vector<1x128xi32>
    %16 = arith.andi %3, %15 : vector<1x128xi32>
    %17 = vector.shape_cast %16 : vector<1x128xi32> to vector<1x128xi32>
    %18 = vector.broadcast %17 : vector<1x128xi32> to vector<32x128xi32>
    %c0_13 = arith.constant 0 : index
    %c0_14 = arith.constant 0 : index
    %c0_15 = arith.constant 0 : index
    %19 = vector.load %arg3[%c0_13, %c0_14, %c0_15] : memref<1x32x128xf32, #tpu.memory_space<vmem>>, vector<1x32x128xf32>
    %20 = vector.shape_cast %19 : vector<1x32x128xf32> to vector<32x128xf32>
    %21 = vector.shape_cast %18 : vector<32x128xi32> to vector<32x128x1xi32>
    %22 = vector.shape_cast %21 : vector<32x128x1xi32> to vector<32x128xi32>
    %23 = tpu.dynamic_gather %20[%22] in [1] : vector<32x128xf32>, vector<32x128xi32> -> vector<32x128xf32>
    %24 = tpu.concatenate %14, %23 in 0 : vector<32x128xf32>, vector<32x128xf32> -> vector<64x128xf32>
    %25 = arith.truncf %24 : vector<64x128xf32> to vector<64x128xbf16>
    %cst = arith.constant dense<0.000000e+00> : vector<8x128xf32>
    %26 = tpu.matmul %4, %25, %cst {dimension_numbers = #tpu.dot_dimension_numbers<[1], [0], [0], [1], [0, 0, 1, 1], [], []>} : vector<8x64xbf16>, vector<64x128xbf16>, vector<8x128xf32> -> vector<8x128xf32>
    %27 = vector.broadcast %5 : vector<8x1xf32> to vector<8x128xf32>
    %28 = arith.addf %26, %27 : vector<8x128xf32>
    %c0_16 = arith.constant 0 : index
    %c0_17 = arith.constant 0 : index
    %29 = vector.load %arg6[%c0_16, %c0_17] : memref<8x128xf32, #tpu.memory_space<vmem>>, vector<8x128xf32>
    tpu.vector_store %arg6[%c0_16, %c0_17], %28 {strides = array<i32>} : memref<8x128xf32, #tpu.memory_space<vmem>>, vector<8x128xf32>,
    return
  }
  func.func @transform_0(%arg0: i32) -> (i32, i32, i32) {
    %c0_i32 = arith.constant 0 : i32
    %c0_i32_0 = arith.constant 0 : i32
    %c0_i32_1 = arith.constant 0 : i32
    return %arg0, %c0_i32, %c0_i32_0 : i32, i32, i32
  }
  func.func @transform_1(%arg0: i32) -> (i32, i32, i32) {
    %c0_i32 = arith.constant 0 : i32
    %c0_i32_0 = arith.constant 0 : i32
    %c0_i32_1 = arith.constant 0 : i32
    return %arg0, %c0_i32, %c0_i32_0 : i32, i32, i32
  }
  func.func @transform_2(%arg0: i32) -> (i32, i32, i32) {
    %c0_i32 = arith.constant 0 : i32
    %c0_i32_0 = arith.constant 0 : i32
    %c0_i32_1 = arith.constant 0 : i32
    %c0_i32_2 = arith.constant 0 : i32
    return %c0_i32, %c0_i32_0, %c0_i32_1 : i32, i32, i32
  }
  func.func @transform_3(%arg0: i32) -> (i32, i32) {
    %c0_i32 = arith.constant 0 : i32
    %c0_i32_0 = arith.constant 0 : i32
    %c0_i32_1 = arith.constant 0 : i32
    return %c0_i32, %c0_i32_0 : i32, i32
  }
  func.func @transform_4(%arg0: i32) -> (i32, i32) {
    %c0_i32 = arith.constant 0 : i32
    %c0_i32_0 = arith.constant 0 : i32
    %c0_i32_1 = arith.constant 0 : i32
    return %c0_i32, %c0_i32_0 : i32, i32
  }
  func.func @transform_5(%arg0: i32) -> (i32, i32) {
    %c0_i32 = arith.constant 0 : i32
    %c0_i32_0 = arith.constant 0 : i32
    return %c0_i32, %arg0 : i32, i32
  }
}

</mosaic_0001>

<llo_original>
// kernel: tpu_custom_call.1
$region0: #{tpu_custom_call.1}
  #allocation0 [shape = 'u32[]', space=smem, size = 0x4, offset = 0x4, fixed_abs, tag = 'smem constant byte address 0x4 - core index']
  #allocation1 [shape = 'u32[144,128]{1,0:T(1,128)}', space=vmem, size = 0x12000, scoped, tag = 'internal scratch']
  %s0 = inlined_call_operand.vmem [shape: s32[1,1,128], index: 0, kind: input, shape index: {}]
  %s1 = inlined_call_operand.vmem [shape: s32[1,1,128], index: 1, kind: input, shape index: {}]
  %s2 = inlined_call_operand.hbm [shape: f32[1,32,128], index: 2, kind: input, shape index: {}]
  %s3 = inlined_call_operand.vmem [shape: bf16[8,64], index: 3, kind: input, shape index: {}]
  %s4 = inlined_call_operand.vmem [shape: f32[8,1], index: 4, kind: input, shape index: {}]
  %s5 = inlined_call_operand.hbm [shape: f32[8,128], index: 5, kind: output, shape index: {}]
  %s6 = sld [smem:[#allocation0]]
  $region34: #{tpu_custom_call.1} parent=0
    _
  %s8 = ssub.s32 1, %s6
  %s9 = scalar_select 0, %s8, %s6
  $region1: #{tpu_custom_call.1} parent=0
    #allocation2 [shape = 'u8[16384]{0}', space=vmem, size = 0x4000, scoped, tag = 'input window, operand 2, single buffered']
    #allocation3 [shape = 's32[1]{0}', space=sflag, size = 0x4, scoped, tag = 'scoped memory for tpu_custom_call.1']
    #allocation4 [shape = 's32[1]{0}', space=sflag, size = 0x4, scoped, tag = 'scoped memory for tpu_custom_call.1']
    #allocation5 [shape = 'u8[4096]{0}', space=vmem, size = 0x1000, scoped, tag = 'output window, operand 0, single buffered']
    %10 = vsyncpa [#allocation3], 0
    %11 = vsyncpa [#allocation4], 0
    // Predicated region
    $region2: #{tpu_custom_call.1} parent=1 // pred_check
      _
    $region3: #{tpu_custom_call.1} parent=1 // pred_check_branch
      %13 = sbr.rel (0) target = $region5
    $region4: #{tpu_custom_call.1} parent=1 // pred_region
      _
    $region5: #{tpu_custom_call.1} parent=1 // pred_fallthru
      _
    // Predicated region
    $region6: #{tpu_custom_call.1} parent=1 // pred_check
      _
    $region7: #{tpu_custom_call.1} parent=1 // pred_check_branch
      %15 = sbr.rel (0) target = $region9
    $region8: #{tpu_custom_call.1} parent=1 // pred_region
      _
    $region9: #{tpu_custom_call.1} parent=1 // pred_fallthru
      _
    // Predicated region
    $region10: #{tpu_custom_call.1} parent=1 // pred_check
      _
    $region11: #{tpu_custom_call.1} parent=1 // pred_check_branch
      %17 = sbr.rel (0) target = $region13
    $region12: #{tpu_custom_call.1} parent=1 // pred_region
      %s19 = ssub.s32 512, 512
      %20 = vsyncadd [#allocation3], %s19
      %s21 = sshll.u32 [#allocation2], 4
      %s22 = int_to_ptr.vmem [resolvable:$true] %s21
      %27 = dma.hbm_to_vmem [thread:$0]  %s2, 512, %s22, [#allocation3], 128, 128, 8
    $region13: #{tpu_custom_call.1} parent=1 // pred_fallthru
      _
    // Predicated region
    $region14: #{tpu_custom_call.1} parent=1 // pred_check
      _
    $region15: #{tpu_custom_call.1} parent=1 // pred_check_branch
      %29 = sbr.rel (0) target = $region17
    $region16: #{tpu_custom_call.1} parent=1 // pred_region
      _
    $region17: #{tpu_custom_call.1} parent=1 // pred_fallthru
      _
    // Predicated region
    $region18: #{tpu_custom_call.1} parent=1 // pred_check
      _
    $region19: #{tpu_custom_call.1} parent=1 // pred_check_branch
      %31 = sbr.rel (0) target = $region21
    $region20: #{tpu_custom_call.1} parent=1 // pred_region
      _
    $region21: #{tpu_custom_call.1} parent=1 // pred_fallthru
      _
    // Predicated region
    $region22: #{tpu_custom_call.1} parent=1 // pred_check
      _
    $region23: #{tpu_custom_call.1} parent=1 // pred_check_branch
      %33 = sbr.rel (0) target = $region25
    $region24: #{tpu_custom_call.1} parent=1 // pred_region
      %34 = dma.done [#allocation3], 512
    $region25: #{tpu_custom_call.1} parent=1 // pred_fallthru
      _
    %v36 = vld [vmem:[%s0] sm:$0x1]
    %v37 = vld [vmem:[%s1] sm:$0x1]
    %v38 = vld [vmem:[%s3] sm:$0xf]
    %v39 = vld [vmem:[%s4] sm:$0xff]
    %v40 = vand.u32 %v36, 127
    %v41 = vlaneseq
    %v42 = vshrl.u32 %v41, 7
    %v43 = vsub.s32 0, %v42
    %v44 = vrot.slane %v40, %v43
    %v45 = vld [vmem:[#allocation2] sm:$0xff]
    %v46 = vld [vmem:[#allocation2 + $0x8] sm:$0xff]
    %v47 = vld [vmem:[#allocation2 + $0x10] sm:$0xff]
    %v48 = vld [vmem:[#allocation2 + $0x18] sm:$0xff]
    %49 = vset.pattern.permute.xlu0 %v44
    %50 = vperm.xlu0 %49, %v45
    %v51 = vpop.permute.xlu0 %50
    %52 = vset.pattern.permute.xlu0 %v44
    %53 = vperm.xlu0 %52, %v46
    %v54 = vpop.permute.xlu0 %53
    %55 = vset.pattern.permute.xlu0 %v44
    %56 = vperm.xlu0 %55, %v47
    %v57 = vpop.permute.xlu0 %56
    %58 = vset.pattern.permute.xlu0 %v44
    %59 = vperm.xlu0 %58, %v48
    %v60 = vpop.permute.xlu0 %59
    %v61 = vand.u32 %v37, 127
    %v62 = vlaneseq
    %v63 = vshrl.u32 %v62, 7
    %v64 = vsub.s32 0, %v63
    %v65 = vrot.slane %v61, %v64
    %66 = vset.pattern.permute.xlu0 %v65
    %67 = vperm.xlu0 %66, %v45
    %v68 = vpop.permute.xlu0 %67
    %69 = vset.pattern.permute.xlu0 %v65
    %70 = vperm.xlu0 %69, %v46
    %v71 = vpop.permute.xlu0 %70
    %72 = vset.pattern.permute.xlu0 %v65
    %73 = vperm.xlu0 %72, %v47
    %v74 = vpop.permute.xlu0 %73
    %75 = vset.pattern.permute.xlu0 %v65
    %76 = vperm.xlu0 %75, %v48
    %v77 = vpop.permute.xlu0 %76
    %v78 = vpack.c.bf16 %v54, %v51
    %v79 = vpack.c.bf16 %v60, %v57
    %v80 = vpack.c.bf16 %v71, %v68
    %v81 = vpack.c.bf16 %v77, %v74
    %83 = vset.pattern.permute.xlu0 0
    %84 = vperm.xlu0 %83, %v39
    %v85 = vpop.permute.xlu0 %84
    %vm87 = vcmask 523264
    %v89 = vsel %vm87, %v38, 0
    %91 = vmatprep.subr.bf16.mxu0 0
    %92 = vmatpush1.bf16.msra.mxu0 %v78
    %93 = vmatprep.subr.bf16.mxu0 0
    %94 = vmatpush1.bf16.msra.mxu0 %v79
    %95 = vmatprep.subr.bf16.mxu0 0
    %96 = vmatpush1.bf16.msra.mxu0 %v80
    %97 = vmatprep.subr.bf16.mxu0 0
    %98 = vmatpush1.bf16.msra.mxu0 %v81
    %99 = vmatprep.subr.bf16.mxu0 0
    %100 = vmatpush1.bf16.msra.mxu0 0
    %101 = vmatprep.subr.bf16.mxu0 0
    %102 = vmatpush1.bf16.msra.mxu0 0
    %103 = vmatprep.subr.bf16.mxu0 0
    %104 = vmatpush1.bf16.msra.mxu0 0
    %105 = vmatprep.subr.bf16.mxu0 0
    %106 = vmatpush1.bf16.msra.mxu0 0
    %107 = vmatprep.subr.bf16.mxu0 0
    %108 = vmatpush1.bf16.msra.mxu0 0
    %109 = vmatprep.subr.bf16.mxu0 0
    %110 = vmatpush1.bf16.msra.mxu0 0
    %111 = vmatprep.subr.bf16.mxu0 0
    %112 = vmatpush1.bf16.msra.mxu0 0
    %113 = vmatprep.subr.bf16.mxu0 0
    %114 = vmatpush1.bf16.msra.mxu0 0
    %115 = vmatprep.subr.bf16.mxu0 0
    %116 = vmatpush1.bf16.msra.mxu0 0
    %117 = vmatprep.subr.bf16.mxu0 0
    %118 = vmatpush1.bf16.msra.mxu0 0
    %119 = vmatprep.subr.bf16.mxu0 0
    %120 = vmatpush1.bf16.msra.mxu0 0
    %121 = vmatprep.subr.bf16.mxu0 0
    %122 = vmatpush1.bf16.msra.mxu0 0
    %123 = vmatprep.mubr.bf16.mxu0 0
    %124 = vmatmul.mubr.bf16.gmra.mrb[0].mxu0 %v89
    %v125 = vpop.f32.mrb[0].mxu0
    %v126 = vadd.f32 %v85, %v125
    %v127 = vpop.f32.mrb[0].mxu0
    %v128 = vpop.f32.mrb[0].mxu0
    %v129 = vpop.f32.mrb[0].mxu0
    %130 = vdwg.mxu0
    %131 = vst [vmem:[#allocation5] sm:$0xff] %v126
    // Predicated region
    $region26: #{tpu_custom_call.1} parent=1 // pred_check
      _
    $region27: #{tpu_custom_call.1} parent=1 // pred_check_branch
      %133 = sbr.rel (0) target = $region29
    $region28: #{tpu_custom_call.1} parent=1 // pred_region
      %s135 = ssub.s32 128, 128
      %136 = vsyncadd [#allocation4], %s135
      %s138 = sshll.u32 [#allocation5], 4
      %s139 = int_to_ptr.vmem [resolvable:$true] %s138
      %141 = dma.vmem_to_hbm [thread:$0]  %s139, 128, %s5, [#allocation4]
    $region29: #{tpu_custom_call.1} parent=1 // pred_fallthru
      _
    // Predicated region
    $region30: #{tpu_custom_call.1} parent=1 // pred_check
      _
    $region31: #{tpu_custom_call.1} parent=1 // pred_check_branch
      %143 = sbr.rel (0) target = $region33
    $region32: #{tpu_custom_call.1} parent=1 // pred_region
      %144 = dma.done [#allocation4], 128
    $region33: #{tpu_custom_call.1} parent=1 // pred_fallthru
      _
    %145 = vsyncpa [#allocation3], 1
    %146 = vsyncpa [#allocation4], 1

</llo_original>
